<compile_context>
chip_gen: v5e
topology: v5e:2x2
jax: 0.10.0
libtpu: 0.0.40
codegen_flags: <defaults>
</compile_context>

<pallas_src>
import jax
import jax.numpy as jnp
from jax.experimental import pallas as pl
from jax.experimental.pallas import tpu as pltpu

BN_EPS = 1e-5  # nn.BatchNorm1d default eps


def _round_up(v, m):
    return (v + m - 1) // m * m


def _make_mlp_kernel(num_layers, compute_dtype):
    """Fused kernel: num_layers (w, b) pairs (BN already folded), then out_ref.

    Hidden layers: h = relu(h @ w + b); final layer: sigmoid(h @ w + b).
    """

    def kernel(x_ref, *refs):
        out_ref = refs[-1]
        p = refs[:-1]
        # x.type(torch.FloatTensor): cast in-kernel, hidden under the tile DMA.
        h = x_ref[...].astype(jnp.float32)
        for i in range(num_layers):
            w, b = p[2 * i], p[2 * i + 1]
            h = jnp.dot(h.astype(compute_dtype), w[...],
                        preferred_element_type=jnp.float32) + b[...]
            if i < num_layers - 1:
                h = jnp.maximum(h, 0.0)  # ReLU on hidden layers only
        out_ref[...] = jax.nn.sigmoid(h)

    return kernel


def _fold_bn(params, weight_dtype):
    """Fold eval-mode BatchNorm1d into the following Linear.

    Input `params` per hidden layer: (w, b, gamma, beta, run_mean, run_var),
    then the final (w, b).  Since the block is
        Linear -> ReLU -> BN -> Dropout -> (next) Linear,
    BN(relu) @ W_next + b_next == relu @ (scale[:,None]*W_next)
                                  + (shift @ W_next + b_next)
    with scale = gamma*rsqrt(rv+eps), shift = beta - rm*scale.
    Weights are emitted in `weight_dtype` (bf16 default), biases stay f32.
    """
    num_hidden = (len(params) - 2) // 6
    folded = []
    scale = None
    shift = None
    idx = 0
    for _ in range(num_hidden):
        w, b, g, be, rm, rv = params[idx:idx + 6]
        idx += 6
        w = w.astype(jnp.float32)
        b = jnp.reshape(b, (1, -1)).astype(jnp.float32)
        if scale is not None:  # absorb previous layer's BN
            b = b + shift @ w
            w = scale[:, None] * w
        folded += [w.astype(weight_dtype), b]
        s = jnp.reshape(g, (-1,)) * jax.lax.rsqrt(jnp.reshape(rv, (-1,)) + BN_EPS)
        scale = s
        shift = jnp.reshape(jnp.reshape(be, (-1,)) - jnp.reshape(rm, (-1,)) * s, (1, -1))

    w, b = params[idx], params[idx + 1]
    w = w.astype(jnp.float32)
    b = jnp.reshape(b, (1, -1)).astype(jnp.float32)
    if scale is not None:
        b = b + shift @ w
        w = scale[:, None] * w
    folded += [w.astype(weight_dtype), b]
    return folded


def mlp_forward(x, params, num_labels, *, weight_dtype=jnp.bfloat16,
                target_tile_hbm_bytes=2 * 1024 * 1024, max_tb=4096):
    """Run the fused MLP kernel. `params` is the flat PyTorch-style list."""
    folded = _fold_bn(params, weight_dtype)
    num_layers = len(folded) // 2
    batch, in_dim = x.shape
    widths = [in_dim] + [int(folded[2 * i].shape[1]) for i in range(num_layers)]
    assert widths[-1] == num_labels

    # ---- generation-aware per-TensorCore VMEM budget -----------------------
    try:
        vmem_cap = int(pltpu.get_tpu_info().vmem_capacity_bytes)
    except Exception:
        vmem_cap = 64 * 1024 * 1024  # conservative (v7x per-TC)
    vmem_budget = int(vmem_cap * 0.75)

    param_bytes = sum(int(p.size) * p.dtype.itemsize for p in folded)
    x_itemsize = jnp.dtype(x.dtype).itemsize
    max_width = max(widths)
    # per-row VMEM: pipelined x tile (2 bufs) + output tile (2 bufs) + f32/bf16
    # working copies of the widest intermediate activation.
    per_row_vmem = (2 * in_dim * x_itemsize + 2 * num_labels * 4 + 6 * max_width)
    headroom = 2 * 1024 * 1024

    if param_bytes + headroom + 8 * per_row_vmem > vmem_budget:
        # TODO(synk): fall back to a layer-/out-feature-tiled grid (weights
        # indexed by a grid axis) when folded weights don't fit per-core VMEM.
        raise ValueError("folded weights exceed the per-core VMEM budget; "
                         "feature-tiled fallback not implemented")

    # ---- batch tile: move >= ~2 MiB of HBM per grid step --------------------
    hbm_row_bytes = in_dim * x_itemsize + num_labels * 4
    tb = _round_up(pl.cdiv(target_tile_hbm_bytes, hbm_row_bytes), 8)
    tb = min(tb, max_tb)
    tb_cap = (vmem_budget - param_bytes - headroom) // per_row_vmem
    tb = min(tb, max(8, (tb_cap // 8) * 8))
    # v7x: keep >= 2 grid steps when batch permits so ("parallel",) actually
    # shards across both TensorCores.
    if batch >= 16:
        tb = min(tb, _round_up(pl.cdiv(batch, 2), 8))
    if tb >= batch:
        tb = batch  # whole-batch block (block dim == full array dim is legal)
    grid = (pl.cdiv(batch, tb),)

    x_spec = pl.BlockSpec((tb, in_dim), lambda i: (i, 0))
    out_spec = pl.BlockSpec((tb, num_labels), lambda i: (i, 0))
    kernel = _make_mlp_kernel(num_layers, weight_dtype)

    def run(single_buffer_weights):
        if single_buffer_weights:
            # Constant-index resident params: one VMEM buffer is enough.
            w_specs = [pl.BlockSpec(p.shape, lambda i: (0, 0),
                                    pipeline_mode=pl.Buffered(1))
                       for p in folded]
            param_mult = 1
        else:
            w_specs = [pl.BlockSpec(p.shape, lambda i: (0, 0)) for p in folded]
            param_mult = 2
        vmem_limit = int(min(vmem_budget,
                             param_mult * param_bytes + tb * per_row_vmem + headroom))
        vmem_limit = max(vmem_limit, 8 * 1024 * 1024)
        return pl.pallas_call(
            kernel,
            out_shape=jax.ShapeDtypeStruct((batch, num_labels), jnp.float32),
            grid=grid,
            in_specs=[x_spec] + w_specs,
            out_specs=out_spec,
            compiler_params=pltpu.CompilerParams(
                dimension_semantics=("parallel",),
                vmem_limit_bytes=vmem_limit),
        )(x, *folded)

    # TODO(synk): fp8 weights (per-channel scales folded into bias path) are a
    # further 2x on v7x for large layer widths; not worth it at these sizes.
    try:
        return run(True)
    except Exception:
        # pipeline_mode=pl.Buffered(1) unsupported on this jax build: fall back
        # to default double-buffered resident weights.
        return run(False)


def _linear_params(key, fan_in, fan_out):
    # PyTorch nn.Linear default init: U(-1/sqrt(fan_in), 1/sqrt(fan_in))
    kw, kb = jax.random.split(key)
    k = 1.0 / float(fan_in) ** 0.5
    w = jax.random.uniform(kw, (fan_in, fan_out), jnp.float32, -k, k)
    b = jax.random.uniform(kb, (1, fan_out), jnp.float32, -k, k)
    return w, b


def _reference_forward(x, params, num_hidden):
    # Pure-JAX reference (unfolded BN, eval mode) for sanity checking.
    h = x.astype(jnp.float32)
    idx = 0
    for _ in range(num_hidden):
        w, b, g, be, rm, rv = params[idx:idx + 6]
        idx += 6
        h = h @ w + b
        h = jnp.maximum(h, 0.0)
        h = (h - rm) / jnp.sqrt(rv + BN_EPS) * g + be
        # nn.Dropout is identity in eval mode.
    w, b = params[idx], params[idx + 1]
    return jax.nn.sigmoid(h @ w + b)


if __name__ == "__main__":
    # Module config (small): MLP(input_size=32, layers_size=[32, 64, 64], num_labels=8)
    layers_size = [32, 64, 64]
    num_labels = 8
    batch = 8

    key = jax.random.PRNGKey(0)
    num_hidden = len(layers_size) - 1
    kiter = iter(jax.random.split(key, 5 * num_hidden + 2))

    params = []
    for i in range(num_hidden):
        fin, fout = layers_size[i], layers_size[i + 1]
        w, b = _linear_params(next(kiter), fin, fout)
        # Non-trivial BN stats so the wrapper-side fold is actually exercised.
        gamma = jax.random.uniform(next(kiter), (1, fout), jnp.float32, 0.5, 1.5)
        beta = 0.1 * jax.random.normal(next(kiter), (1, fout), jnp.float32)
        rmean = 0.1 * jax.random.normal(next(kiter), (1, fout), jnp.float32)
        rvar = jax.random.uniform(next(kiter), (1, fout), jnp.float32, 0.5, 1.5)
        params += [w, b, gamma, beta, rmean, rvar]
    w_last, b_last = _linear_params(next(kiter), layers_size[-1], num_labels)
    params += [w_last, b_last]

    x = jax.random.normal(next(kiter), (batch, layers_size[0]), jnp.float32)

    ref = _reference_forward(x, params, num_hidden)

    # f32-weight path: must match the unfolded reference to fp tolerance.
    out_f32 = jax.block_until_ready(
        mlp_forward(x, params, num_labels, weight_dtype=jnp.float32))
    assert out_f32.shape == (batch, num_labels)
    assert jnp.allclose(out_f32, ref, atol=1e-4, rtol=1e-4)

    # Default bf16-weight path (f32 accumulation): looser tolerance.
    out = jax.block_until_ready(mlp_forward(x, params, num_labels))
    assert out.shape == (batch, num_labels)
    assert jnp.allclose(out, ref, atol=2e-2, rtol=2e-2)

    print("KERNEL_OK")
</pallas_src>

<mosaic_0001>
module attributes {stable_mosaic.version = 11 : i64} {
  func.func @kernel(%arg0: i32, %arg1: memref<8x32xf32, #tpu.memory_space<vmem>>, %arg2: memref<32x64xf32, #tpu.memory_space<vmem>>, %arg3: memref<1x64xf32, #tpu.memory_space<vmem>>, %arg4: memref<64x64xf32, #tpu.memory_space<vmem>>, %arg5: memref<1x64xf32, #tpu.memory_space<vmem>>, %arg6: memref<64x8xf32, #tpu.memory_space<vmem>>, %arg7: memref<1x8xf32, #tpu.memory_space<vmem>>, %arg8: memref<8x8xf32, #tpu.memory_space<vmem>>) attributes {dimension_semantics = [#tpu.dimension_semantics<parallel>], iteration_bounds = array<i64: 1>, scalar_prefetch = 0 : i64, scratch_operands = 0 : i64, tpu.core_type = #tpu.core_type<tc>, window_params = [{transform_indices = @transform_0, window_bounds = array<i64: 8, 32>}, {pipeline_mode = #tpu.pipeline_mode<synchronous>, transform_indices = @transform_1, window_bounds = array<i64: 32, 64>}, {pipeline_mode = #tpu.pipeline_mode<synchronous>, transform_indices = @transform_2, window_bounds = array<i64: 1, 64>}, {pipeline_mode = #tpu.pipeline_mode<synchronous>, transform_indices = @transform_3, window_bounds = array<i64: 64, 64>}, {pipeline_mode = #tpu.pipeline_mode<synchronous>, transform_indices = @transform_4, window_bounds = array<i64: 1, 64>}, {pipeline_mode = #tpu.pipeline_mode<synchronous>, transform_indices = @transform_5, window_bounds = array<i64: 64, 8>}, {pipeline_mode = #tpu.pipeline_mode<synchronous>, transform_indices = @transform_6, window_bounds = array<i64: 1, 8>}, {transform_indices = @transform_7, window_bounds = array<i64: 8, 8>}]} {
    %c0 = arith.constant 0 : index
    %c0_0 = arith.constant 0 : index
    %0 = vector.load %arg1[%c0, %c0_0] : memref<8x32xf32, #tpu.memory_space<vmem>>, vector<8x32xf32>
    %c0_1 = arith.constant 0 : index
    %c0_2 = arith.constant 0 : index
    %1 = vector.load %arg2[%c0_1, %c0_2] : memref<32x64xf32, #tpu.memory_space<vmem>>, vector<32x64xf32>
    %cst = arith.constant dense<0.000000e+00> : vector<8x64xf32>
    %2 = tpu.matmul %0, %1, %cst {dimension_numbers = #tpu.dot_dimension_numbers<[1], [0], [0], [1], [0, 0, 1, 1], [], []>} : vector<8x32xf32>, vector<32x64xf32>, vector<8x64xf32> -> vector<8x64xf32>
    %c0_3 = arith.constant 0 : index
    %c0_4 = arith.constant 0 : index
    %3 = vector.load %arg3[%c0_3, %c0_4] : memref<1x64xf32, #tpu.memory_space<vmem>>, vector<1x64xf32>
    %4 = vector.broadcast %3 : vector<1x64xf32> to vector<8x64xf32>
    %5 = arith.addf %2, %4 : vector<8x64xf32>
    %cst_5 = arith.constant 0.000000e+00 : f32
    %6 = vector.broadcast %cst_5 : f32 to vector<8x64xf32>
    %7 = arith.maximumf %5, %6 : vector<8x64xf32>
    %c0_6 = arith.constant 0 : index
    %c0_7 = arith.constant 0 : index
    %8 = vector.load %arg4[%c0_6, %c0_7] : memref<64x64xf32, #tpu.memory_space<vmem>>, vector<64x64xf32>
    %cst_8 = arith.constant dense<0.000000e+00> : vector<8x64xf32>
    %9 = tpu.matmul %7, %8, %cst_8 {dimension_numbers = #tpu.dot_dimension_numbers<[1], [0], [0], [1], [0, 0, 1, 1], [], []>} : vector<8x64xf32>, vector<64x64xf32>, vector<8x64xf32> -> vector<8x64xf32>
    %c0_9 = arith.constant 0 : index
    %c0_10 = arith.constant 0 : index
    %10 = vector.load %arg5[%c0_9, %c0_10] : memref<1x64xf32, #tpu.memory_space<vmem>>, vector<1x64xf32>
    %11 = vector.broadcast %10 : vector<1x64xf32> to vector<8x64xf32>
    %12 = arith.addf %9, %11 : vector<8x64xf32>
    %cst_11 = arith.constant 0.000000e+00 : f32
    %13 = vector.broadcast %cst_11 : f32 to vector<8x64xf32>
    %14 = arith.maximumf %12, %13 : vector<8x64xf32>
    %c0_12 = arith.constant 0 : index
    %c0_13 = arith.constant 0 : index
    %15 = vector.load %arg6[%c0_12, %c0_13] : memref<64x8xf32, #tpu.memory_space<vmem>>, vector<64x8xf32>
    %cst_14 = arith.constant dense<0.000000e+00> : vector<8x8xf32>
    %16 = tpu.matmul %14, %15, %cst_14 {dimension_numbers = #tpu.dot_dimension_numbers<[1], [0], [0], [1], [0, 0, 1, 1], [], []>} : vector<8x64xf32>, vector<64x8xf32>, vector<8x8xf32> -> vector<8x8xf32>
    %c0_15 = arith.constant 0 : index
    %c0_16 = arith.constant 0 : index
    %17 = vector.load %arg7[%c0_15, %c0_16] : memref<1x8xf32, #tpu.memory_space<vmem>>, vector<1x8xf32>
    %18 = vector.broadcast %17 : vector<1x8xf32> to vector<8x8xf32>
    %19 = arith.addf %16, %18 : vector<8x8xf32>
    %20 = arith.negf %19 : vector<8x8xf32>
    %21 = math.exp %20 : vector<8x8xf32>
    %cst_17 = arith.constant 1.000000e+00 : f32
    %22 = vector.broadcast %cst_17 : f32 to vector<8x8xf32>
    %23 = arith.addf %22, %21 : vector<8x8xf32>
    %24 = arith.divf %22, %23 : vector<8x8xf32>
    %c0_18 = arith.constant 0 : index
    %c0_19 = arith.constant 0 : index
    %25 = vector.load %arg8[%c0_18, %c0_19] : memref<8x8xf32, #tpu.memory_space<vmem>>, vector<8x8xf32>
    tpu.vector_store %arg8[%c0_18, %c0_19], %24 {strides = array<i32>} : memref<8x8xf32, #tpu.memory_space<vmem>>, vector<8x8xf32>,
    return
  }
  func.func @transform_0(%arg0: i32) -> (i32, i32) {
    %c0_i32 = arith.constant 0 : i32
    %c0_i32_0 = arith.constant 0 : i32
    return %arg0, %c0_i32 : i32, i32
  }
  func.func @transform_1(%arg0: i32) -> (i32, i32) {
    %c0_i32 = arith.constant 0 : i32
    %c0_i32_0 = arith.constant 0 : i32
    %c0_i32_1 = arith.constant 0 : i32
    return %c0_i32, %c0_i32_0 : i32, i32
  }
  func.func @transform_2(%arg0: i32) -> (i32, i32) {
    %c0_i32 = arith.constant 0 : i32
    %c0_i32_0 = arith.constant 0 : i32
    %c0_i32_1 = arith.constant 0 : i32
    return %c0_i32, %c0_i32_0 : i32, i32
  }
  func.func @transform_3(%arg0: i32) -> (i32, i32) {
    %c0_i32 = arith.constant 0 : i32
    %c0_i32_0 = arith.constant 0 : i32
    %c0_i32_1 = arith.constant 0 : i32
    return %c0_i32, %c0_i32_0 : i32, i32
  }
  func.func @transform_4(%arg0: i32) -> (i32, i32) {
    %c0_i32 = arith.constant 0 : i32
    %c0_i32_0 = arith.constant 0 : i32
    %c0_i32_1 = arith.constant 0 : i32
    return %c0_i32, %c0_i32_0 : i32, i32
  }
  func.func @transform_5(%arg0: i32) -> (i32, i32) {
    %c0_i32 = arith.constant 0 : i32
    %c0_i32_0 = arith.constant 0 : i32
    %c0_i32_1 = arith.constant 0 : i32
    return %c0_i32, %c0_i32_0 : i32, i32
  }
  func.func @transform_6(%arg0: i32) -> (i32, i32) {
    %c0_i32 = arith.constant 0 : i32
    %c0_i32_0 = arith.constant 0 : i32
    %c0_i32_1 = arith.constant 0 : i32
    return %c0_i32, %c0_i32_0 : i32, i32
  }
  func.func @transform_7(%arg0: i32) -> (i32, i32) {
    %c0_i32 = arith.constant 0 : i32
    %c0_i32_0 = arith.constant 0 : i32
    return %arg0, %c0_i32 : i32, i32
  }
}

module attributes {stable_mosaic.version = 11 : i64} {
  func.func @kernel(%arg0: i32, %arg1: memref<8x32xf32, #tpu.memory_space<vmem>>, %arg2: memref<32x64xf32, #tpu.memory_space<vmem>>, %arg3: memref<1x64xf32, #tpu.memory_space<vmem>>, %arg4: memref<64x64xf32, #tpu.memory_space<vmem>>, %arg5: memref<1x64xf32, #tpu.memory_space<vmem>>, %arg6: memref<64x8xf32, #tpu.memory_space<vmem>>, %arg7: memref<1x8xf32, #tpu.memory_space<vmem>>, %arg8: memref<8x8xf32, #tpu.memory_space<vmem>>) attributes {dimension_semantics = [#tpu.dimension_semantics<parallel>], iteration_bounds = array<i64: 1>, scalar_prefetch = 0 : i64, scratch_operands = 0 : i64, tpu.core_type = #tpu.core_type<tc>, window_params = [{transform_indices = @transform_0, window_bounds = array<i64: 8, 32>}, {pipeline_mode = #tpu.pipeline_mode<synchronous>, transform_indices = @transform_1, window_bounds = array<i64: 32, 64>}, {pipeline_mode = #tpu.pipeline_mode<synchronous>, transform_indices = @transform_2, window_bounds = array<i64: 1, 64>}, {pipeline_mode = #tpu.pipeline_mode<synchronous>, transform_indices = @transform_3, window_bounds = array<i64: 64, 64>}, {pipeline_mode = #tpu.pipeline_mode<synchronous>, transform_indices = @transform_4, window_bounds = array<i64: 1, 64>}, {pipeline_mode = #tpu.pipeline_mode<synchronous>, transform_indices = @transform_5, window_bounds = array<i64: 64, 8>}, {pipeline_mode = #tpu.pipeline_mode<synchronous>, transform_indices = @transform_6, window_bounds = array<i64: 1, 8>}, {transform_indices = @transform_7, window_bounds = array<i64: 8, 8>}]} {
    %c0 = arith.constant 0 : index
    %c0_0 = arith.constant 0 : index
    %0 = vector.load %arg1[%c0, %c0_0] : memref<8x32xf32, #tpu.memory_space<vmem>>, vector<8x32xf32>
    %c0_1 = arith.constant 0 : index
    %c0_2 = arith.constant 0 : index
    %1 = vector.load %arg2[%c0_1, %c0_2] : memref<32x64xf32, #tpu.memory_space<vmem>>, vector<32x64xf32>
    %cst = arith.constant dense<0.000000e+00> : vector<8x64xf32>
    %2 = tpu.matmul %0, %1, %cst {dimension_numbers = #tpu.dot_dimension_numbers<[1], [0], [0], [1], [0, 0, 1, 1], [], []>} : vector<8x32xf32>, vector<32x64xf32>, vector<8x64xf32> -> vector<8x64xf32>
    %c0_3 = arith.constant 0 : index
    %c0_4 = arith.constant 0 : index
    %3 = vector.load %arg3[%c0_3, %c0_4] : memref<1x64xf32, #tpu.memory_space<vmem>>, vector<1x64xf32>
    %4 = vector.broadcast %3 : vector<1x64xf32> to vector<8x64xf32>
    %5 = arith.addf %2, %4 : vector<8x64xf32>
    %cst_5 = arith.constant 0.000000e+00 : f32
    %6 = vector.broadcast %cst_5 : f32 to vector<8x64xf32>
    %7 = arith.maximumf %5, %6 : vector<8x64xf32>
    %c0_6 = arith.constant 0 : index
    %c0_7 = arith.constant 0 : index
    %8 = vector.load %arg4[%c0_6, %c0_7] : memref<64x64xf32, #tpu.memory_space<vmem>>, vector<64x64xf32>
    %cst_8 = arith.constant dense<0.000000e+00> : vector<8x64xf32>
    %9 = tpu.matmul %7, %8, %cst_8 {dimension_numbers = #tpu.dot_dimension_numbers<[1], [0], [0], [1], [0, 0, 1, 1], [], []>} : vector<8x64xf32>, vector<64x64xf32>, vector<8x64xf32> -> vector<8x64xf32>
    %c0_9 = arith.constant 0 : index
    %c0_10 = arith.constant 0 : index
    %10 = vector.load %arg5[%c0_9, %c0_10] : memref<1x64xf32, #tpu.memory_space<vmem>>, vector<1x64xf32>
    %11 = vector.broadcast %10 : vector<1x64xf32> to vector<8x64xf32>
    %12 = arith.addf %9, %11 : vector<8x64xf32>
    %cst_11 = arith.constant 0.000000e+00 : f32
    %13 = vector.broadcast %cst_11 : f32 to vector<8x64xf32>
    %14 = arith.maximumf %12, %13 : vector<8x64xf32>
    %c0_12 = arith.constant 0 : index
    %c0_13 = arith.constant 0 : index
    %15 = vector.load %arg6[%c0_12, %c0_13] : memref<64x8xf32, #tpu.memory_space<vmem>>, vector<64x8xf32>
    %cst_14 = arith.constant dense<0.000000e+00> : vector<8x8xf32>
    %16 = tpu.matmul %14, %15, %cst_14 {dimension_numbers = #tpu.dot_dimension_numbers<[1], [0], [0], [1], [0, 0, 1, 1], [], []>} : vector<8x64xf32>, vector<64x8xf32>, vector<8x8xf32> -> vector<8x8xf32>
    %c0_15 = arith.constant 0 : index
    %c0_16 = arith.constant 0 : index
    %17 = vector.load %arg7[%c0_15, %c0_16] : memref<1x8xf32, #tpu.memory_space<vmem>>, vector<1x8xf32>
    %18 = vector.broadcast %17 : vector<1x8xf32> to vector<8x8xf32>
    %19 = arith.addf %16, %18 : vector<8x8xf32>
    %20 = arith.negf %19 : vector<8x8xf32>
    %21 = math.exp %20 : vector<8x8xf32>
    %cst_17 = arith.constant 1.000000e+00 : f32
    %22 = vector.broadcast %cst_17 : f32 to vector<8x8xf32>
    %23 = arith.addf %22, %21 : vector<8x8xf32>
    %24 = arith.divf %22, %23 : vector<8x8xf32>
    %c0_18 = arith.constant 0 : index
    %c0_19 = arith.constant 0 : index
    %25 = vector.load %arg8[%c0_18, %c0_19] : memref<8x8xf32, #tpu.memory_space<vmem>>, vector<8x8xf32>
    tpu.vector_store %arg8[%c0_18, %c0_19], %24 {strides = array<i32>} : memref<8x8xf32, #tpu.memory_space<vmem>>, vector<8x8xf32>,
    return
  }
  func.func @transform_0(%arg0: i32) -> (i32, i32) {
    %c0_i32 = arith.constant 0 : i32
    %c0_i32_0 = arith.constant 0 : i32
    return %arg0, %c0_i32 : i32, i32
  }
  func.func @transform_1(%arg0: i32) -> (i32, i32) {
    %c0_i32 = arith.constant 0 : i32
    %c0_i32_0 = arith.constant 0 : i32
    %c0_i32_1 = arith.constant 0 : i32
    return %c0_i32, %c0_i32_0 : i32, i32
  }
  func.func @transform_2(%arg0: i32) -> (i32, i32) {
    %c0_i32 = arith.constant 0 : i32
    %c0_i32_0 = arith.constant 0 : i32
    %c0_i32_1 = arith.constant 0 : i32
    return %c0_i32, %c0_i32_0 : i32, i32
  }
  func.func @transform_3(%arg0: i32) -> (i32, i32) {
    %c0_i32 = arith.constant 0 : i32
    %c0_i32_0 = arith.constant 0 : i32
    %c0_i32_1 = arith.constant 0 : i32
    return %c0_i32, %c0_i32_0 : i32, i32
  }
  func.func @transform_4(%arg0: i32) -> (i32, i32) {
    %c0_i32 = arith.constant 0 : i32
    %c0_i32_0 = arith.constant 0 : i32
    %c0_i32_1 = arith.constant 0 : i32
    return %c0_i32, %c0_i32_0 : i32, i32
  }
  func.func @transform_5(%arg0: i32) -> (i32, i32) {
    %c0_i32 = arith.constant 0 : i32
    %c0_i32_0 = arith.constant 0 : i32
    %c0_i32_1 = arith.constant 0 : i32
    return %c0_i32, %c0_i32_0 : i32, i32
  }
  func.func @transform_6(%arg0: i32) -> (i32, i32) {
    %c0_i32 = arith.constant 0 : i32
    %c0_i32_0 = arith.constant 0 : i32
    %c0_i32_1 = arith.constant 0 : i32
    return %c0_i32, %c0_i32_0 : i32, i32
  }
  func.func @transform_7(%arg0: i32) -> (i32, i32) {
    %c0_i32 = arith.constant 0 : i32
    %c0_i32_0 = arith.constant 0 : i32
    return %arg0, %c0_i32 : i32, i32
  }
}

</mosaic_0001>

<llo_original>
// kernel: tpu_custom_call.1
$region0: #{tpu_custom_call.1}
  #allocation0 [shape = 'u32[]', space=smem, size = 0x4, offset = 0x4, fixed_abs, tag = 'smem constant byte address 0x4 - core index']
  #allocation1 [shape = 'u32[72,128]{1,0:T(1,128)}', space=vmem, size = 0x9000, scoped, tag = 'internal scratch']
  %s0 = inlined_call_operand.vmem [shape: f32[8,32], index: 0, kind: input, shape index: {}]
  %s1 = inlined_call_operand.hbm [shape: f32[32,64], index: 1, kind: input, shape index: {}]
  %s2 = inlined_call_operand.vmem [shape: f32[1,64], index: 2, kind: input, shape index: {}]
  %s3 = inlined_call_operand.vmem [shape: f32[64,64], index: 3, kind: input, shape index: {}]
  %s4 = inlined_call_operand.vmem [shape: f32[1,64], index: 4, kind: input, shape index: {}]
  %s5 = inlined_call_operand.vmem [shape: f32[64,8], index: 5, kind: input, shape index: {}]
  %s6 = inlined_call_operand.vmem [shape: f32[1,8], index: 6, kind: input, shape index: {}]
  %s7 = inlined_call_operand.hbm [shape: f32[8,8], index: 7, kind: output, shape index: {}]
  %s8 = sld [smem:[#allocation0]]
  $region42: #{tpu_custom_call.1} parent=0
    _
  %s10 = ssub.s32 1, %s8
  %s11 = scalar_select 0, %s10, %s8
  $region1: #{tpu_custom_call.1} parent=0
    #allocation2 [shape = 'u8[16384]{0}', space=vmem, size = 0x4000, scoped, tag = 'input window, operand 1, single buffered']
    #allocation3 [shape = 's32[1]{0}', space=sflag, size = 0x4, scoped, tag = 'scoped memory for tpu_custom_call.1']
    #allocation4 [shape = 's32[1]{0}', space=sflag, size = 0x4, scoped, tag = 'scoped memory for tpu_custom_call.1']
    #allocation5 [shape = 'u8[4096]{0}', space=vmem, size = 0x1000, scoped, tag = 'output window, operand 0, single buffered']
    %12 = vsyncpa [#allocation3], 0
    %13 = vsyncpa [#allocation4], 0
    // Predicated region
    $region2: #{tpu_custom_call.1} parent=1 // pred_check
      _
    $region3: #{tpu_custom_call.1} parent=1 // pred_check_branch
      %15 = sbr.rel (0) target = $region5
    $region4: #{tpu_custom_call.1} parent=1 // pred_region
      _
    $region5: #{tpu_custom_call.1} parent=1 // pred_fallthru
      _
    // Predicated region
    $region6: #{tpu_custom_call.1} parent=1 // pred_check
      _
    $region7: #{tpu_custom_call.1} parent=1 // pred_check_branch
      %17 = sbr.rel (0) target = $region9
    $region8: #{tpu_custom_call.1} parent=1 // pred_region
      %19 = vsyncadd [#allocation3], 0
      %s20 = sshll.u32 %s1, 4
      %s21 = int_to_ptr.hbm [resolvable:$true] %s20
      %s22 = sshll.u32 [#allocation2], 4
      %s23 = int_to_ptr.vmem [resolvable:$true] %s22
      %28 = dma.hbm_to_vmem [thread:$0]  %s21, 512, %s23, [#allocation3], 128, 128, 8
    $region9: #{tpu_custom_call.1} parent=1 // pred_fallthru
      _
    // Predicated region
    $region10: #{tpu_custom_call.1} parent=1 // pred_check
      _
    $region11: #{tpu_custom_call.1} parent=1 // pred_check_branch
      %30 = sbr.rel (0) target = $region13
    $region12: #{tpu_custom_call.1} parent=1 // pred_region
      _
    $region13: #{tpu_custom_call.1} parent=1 // pred_fallthru
      _
    // Predicated region
    $region14: #{tpu_custom_call.1} parent=1 // pred_check
      _
    $region15: #{tpu_custom_call.1} parent=1 // pred_check_branch
      %32 = sbr.rel (0) target = $region17
    $region16: #{tpu_custom_call.1} parent=1 // pred_region
      _
    $region17: #{tpu_custom_call.1} parent=1 // pred_fallthru
      _
    // Predicated region
    $region18: #{tpu_custom_call.1} parent=1 // pred_check
      _
    $region19: #{tpu_custom_call.1} parent=1 // pred_check_branch
      %34 = sbr.rel (0) target = $region21
    $region20: #{tpu_custom_call.1} parent=1 // pred_region
      _
    $region21: #{tpu_custom_call.1} parent=1 // pred_fallthru
      _
    // Predicated region
    $region22: #{tpu_custom_call.1} parent=1 // pred_check
      _
    $region23: #{tpu_custom_call.1} parent=1 // pred_check_branch
      %36 = sbr.rel (0) target = $region25
    $region24: #{tpu_custom_call.1} parent=1 // pred_region
      _
    $region25: #{tpu_custom_call.1} parent=1 // pred_fallthru
      _
    // Predicated region
    $region26: #{tpu_custom_call.1} parent=1 // pred_check
      _
    $region27: #{tpu_custom_call.1} parent=1 // pred_check_branch
      %38 = sbr.rel (0) target = $region29
    $region28: #{tpu_custom_call.1} parent=1 // pred_region
      _
    $region29: #{tpu_custom_call.1} parent=1 // pred_fallthru
      _
    // Predicated region
    $region30: #{tpu_custom_call.1} parent=1 // pred_check
      _
    $region31: #{tpu_custom_call.1} parent=1 // pred_check_branch
      %40 = sbr.rel (0) target = $region33
    $region32: #{tpu_custom_call.1} parent=1 // pred_region
      %42 = dma.done [#allocation3], 512
    $region33: #{tpu_custom_call.1} parent=1 // pred_fallthru
      _
    %v43 = vld [vmem:[%s0] sm:$0xff]
    %v44 = vld [vmem:[#allocation2] sm:$0xff]
    %v45 = vld [vmem:[#allocation2 + $0x8] sm:$0xff]
    %v46 = vld [vmem:[#allocation2 + $0x10] sm:$0xff]
    %v47 = vld [vmem:[#allocation2 + $0x18] sm:$0xff]
    %v48 = vld [vmem:[%s2] sm:$0x1]
    %v50 = vperm.slane %v48, 0
    %vm52 = vcmask 261120
    %v54 = vsel %vm52, %v43, 0
    %56 = vmatpush.msra.mxu0 0.0
    %57 = vmatpush.msra.mxu0 0.0
    %58 = vmatpush.msra.mxu0 0.0
    %59 = vmatpush.msra.mxu0 0.0
    %60 = vmatpush.msra.mxu0 0.0
    %61 = vmatpush.msra.mxu0 0.0
    %62 = vmatpush.msra.mxu0 0.0
    %63 = vmatpush.msra.mxu0 0.0
    %64 = vmatpush.msra.mxu0 0.0
    %65 = vmatpush.msra.mxu0 0.0
    %66 = vmatpush.msra.mxu0 0.0
    %67 = vmatpush.msra.mxu0 0.0
    %68 = vmatpush.msra.mxu0 %v47
    %69 = vmatpush.msra.mxu0 %v46
    %70 = vmatpush.msra.mxu0 %v45
    %71 = vmatpush.msra.mxu0 %v44
    %72 = vmatmul.f32.gmra.mxu0 %v54
    %v73 = vpop.f32.mrf.mxu0
    %v74 = vadd.f32 %v50, %v73
    %75 = vdwg.mxu0
    %v76 = vmax.f32 %v74, 0.0
    %v77 = vld [vmem:[%s3] sm:$0xff]
    %v78 = vld [vmem:[%s3 + $0x8] sm:$0xff]
    %v79 = vld [vmem:[%s3 + $0x10] sm:$0xff]
    %v80 = vld [vmem:[%s3 + $0x18] sm:$0xff]
    %v81 = vld [vmem:[%s3 + $0x20] sm:$0xff]
    %v82 = vld [vmem:[%s3 + $0x28] sm:$0xff]
    %v83 = vld [vmem:[%s3 + $0x30] sm:$0xff]
    %v84 = vld [vmem:[%s3 + $0x38] sm:$0xff]
    %v85 = vld [vmem:[%s4] sm:$0x1]
    %v87 = vperm.slane %v85, 0
    %vm89 = vcmask 523264
    %v91 = vsel %vm89, %v76, 0
    %93 = vmatpush.msra.mxu0 0.0
    %94 = vmatpush.msra.mxu0 0.0
    %95 = vmatpush.msra.mxu0 0.0
    %96 = vmatpush.msra.mxu0 0.0
    %97 = vmatpush.msra.mxu0 0.0
    %98 = vmatpush.msra.mxu0 0.0
    %99 = vmatpush.msra.mxu0 0.0
    %100 = vmatpush.msra.mxu0 0.0
    %101 = vmatpush.msra.mxu0 %v84
    %102 = vmatpush.msra.mxu0 %v83
    %103 = vmatpush.msra.mxu0 %v82
    %104 = vmatpush.msra.mxu0 %v81
    %105 = vmatpush.msra.mxu0 %v80
    %106 = vmatpush.msra.mxu0 %v79
    %107 = vmatpush.msra.mxu0 %v78
    %108 = vmatpush.msra.mxu0 %v77
    %109 = vmatmul.f32.gmra.mxu0 %v91
    %v110 = vpop.f32.mrf.mxu0
    %v111 = vadd.f32 %v87, %v110
    %112 = vdwg.mxu0
    %v113 = vmax.f32 %v111, 0.0
    %v114 = vld [vmem:[%s5] sm:$0xff]
    %v115 = vld [vmem:[%s5 + $0x8] sm:$0xff]
    %v116 = vld [vmem:[%s5 + $0x10] sm:$0xff]
    %v117 = vld [vmem:[%s5 + $0x18] sm:$0xff]
    %v118 = vld [vmem:[%s5 + $0x20] sm:$0xff]
    %v119 = vld [vmem:[%s5 + $0x28] sm:$0xff]
    %v120 = vld [vmem:[%s5 + $0x30] sm:$0xff]
    %v121 = vld [vmem:[%s5 + $0x38] sm:$0xff]
    %v122 = vld [vmem:[%s6] sm:$0x1]
    %v124 = vperm.slane %v122, 0
    %v127 = vsel %vm89, %v113, 0
    %129 = vmatpush.msra.mxu0 0.0
    %130 = vmatpush.msra.mxu0 0.0
    %131 = vmatpush.msra.mxu0 0.0
    %132 = vmatpush.msra.mxu0 0.0
    %133 = vmatpush.msra.mxu0 0.0
    %134 = vmatpush.msra.mxu0 0.0
    %135 = vmatpush.msra.mxu0 0.0
    %136 = vmatpush.msra.mxu0 0.0
    %137 = vmatpush.msra.mxu0 %v121
    %138 = vmatpush.msra.mxu0 %v120
    %139 = vmatpush.msra.mxu0 %v119
    %140 = vmatpush.msra.mxu0 %v118
    %141 = vmatpush.msra.mxu0 %v117
    %142 = vmatpush.msra.mxu0 %v116
    %143 = vmatpush.msra.mxu0 %v115
    %144 = vmatpush.msra.mxu0 %v114
    %145 = vmatmul.f32.gmra.mxu0 %v127
    %v146 = vpop.f32.mrf.mxu0
    %v147 = vadd.f32 %v124, %v146
    %148 = vdwg.mxu0
    %v149 = vxor.u32 %v147, 2147483648
    %v150 = vmul.f32 %v149, 1.442695
    %v151 = vpow.pop %v150
    %v152 = vadd.f32 %v151, 1.0
    %v153 = vrcp.pop %v152
    %v154 = vmul.f32 %v152, %v153
    %v155 = vsub.f32 1.0, %v154
    %v156 = vmul.f32 %v153, %v155
    %v157 = vadd.f32 %v153, %v156
    %vm158 = vweird.f32 %v152
    %vm159 = vweird.f32 %v153
    %vm160 = vmor %vm158, %vm159
    %v161 = vsel %vm160, %v153, %v157
    %v162 = vand.u32 2147483647, %v152
    %vm163 = vcmp.eq.f32.partialorder %v162, 8.507059e+37
    %v164 = vand.u32 %v152, 2147483648
    %v165 = vor.u32 1.1754944e-38, %v164
    %v166 = vsel %vm163, %v165, %v161
    %v167 = vmul.f32 1.0, %v166
    %vm168 = vcmask 64512
    %169 = vst.msk [vmem:[#allocation5] sm:$0xff] %vm168, %v167
    // Predicated region
    $region34: #{tpu_custom_call.1} parent=1 // pred_check
      _
    $region35: #{tpu_custom_call.1} parent=1 // pred_check_branch
      %171 = sbr.rel (0) target = $region37
    $region36: #{tpu_custom_call.1} parent=1 // pred_region
      %173 = vsyncadd [#allocation4], 0
      %s175 = sshll.u32 [#allocation5], 4
      %s176 = int_to_ptr.vmem [resolvable:$true] %s175
      %s177 = sshll.u32 %s7, 4
      %s178 = int_to_ptr.hbm [resolvable:$true] %s177
      %180 = dma.vmem_to_hbm [thread:$0]  %s176, 128, %s178, [#allocation4]
    $region37: #{tpu_custom_call.1} parent=1 // pred_fallthru
      _
    // Predicated region
    $region38: #{tpu_custom_call.1} parent=1 // pred_check
      _
    $region39: #{tpu_custom_call.1} parent=1 // pred_check_branch
      %182 = sbr.rel (0) target = $region41
    $region40: #{tpu_custom_call.1} parent=1 // pred_region
      %184 = dma.done [#allocation4], 128
    $region41: #{tpu_custom_call.1} parent=1 // pred_fallthru
      _
    %185 = vsyncpa [#allocation3], 1
    %186 = vsyncpa [#allocation4], 1

// kernel: tpu_custom_call.1
$region0: #{tpu_custom_call.1}
  #allocation0 [shape = 'u32[]', space=smem, size = 0x4, offset = 0x4, fixed_abs, tag = 'smem constant byte address 0x4 - core index']
  #allocation1 [shape = 'u32[72,128]{1,0:T(1,128)}', space=vmem, size = 0x9000, scoped, tag = 'internal scratch']
  %s0 = inlined_call_operand.vmem [shape: f32[8,32], index: 0, kind: input, shape index: {}]
  %s1 = inlined_call_operand.hbm [shape: f32[32,64], index: 1, kind: input, shape index: {}]
  %s2 = inlined_call_operand.vmem [shape: f32[1,64], index: 2, kind: input, shape index: {}]
  %s3 = inlined_call_operand.vmem [shape: f32[64,64], index: 3, kind: input, shape index: {}]
  %s4 = inlined_call_operand.vmem [shape: f32[1,64], index: 4, kind: input, shape index: {}]
  %s5 = inlined_call_operand.vmem [shape: f32[64,8], index: 5, kind: input, shape index: {}]
  %s6 = inlined_call_operand.vmem [shape: f32[1,8], index: 6, kind: input, shape index: {}]
  %s7 = inlined_call_operand.hbm [shape: f32[8,8], index: 7, kind: output, shape index: {}]
  %s8 = sld [smem:[#allocation0]]
  $region42: #{tpu_custom_call.1} parent=0
    _
  %s10 = ssub.s32 1, %s8
  %s11 = scalar_select 0, %s10, %s8
  $region1: #{tpu_custom_call.1} parent=0
    #allocation2 [shape = 'u8[16384]{0}', space=vmem, size = 0x4000, scoped, tag = 'input window, operand 1, single buffered']
    #allocation3 [shape = 's32[1]{0}', space=sflag, size = 0x4, scoped, tag = 'scoped memory for tpu_custom_call.1']
    #allocation4 [shape = 's32[1]{0}', space=sflag, size = 0x4, scoped, tag = 'scoped memory for tpu_custom_call.1']
    #allocation5 [shape = 'u8[4096]{0}', space=vmem, size = 0x1000, scoped, tag = 'output window, operand 0, single buffered']
    %12 = vsyncpa [#allocation3], 0
    %13 = vsyncpa [#allocation4], 0
    // Predicated region
    $region2: #{tpu_custom_call.1} parent=1 // pred_check
      _
    $region3: #{tpu_custom_call.1} parent=1 // pred_check_branch
      %15 = sbr.rel (0) target = $region5
    $region4: #{tpu_custom_call.1} parent=1 // pred_region
      _
    $region5: #{tpu_custom_call.1} parent=1 // pred_fallthru
      _
    // Predicated region
    $region6: #{tpu_custom_call.1} parent=1 // pred_check
      _
    $region7: #{tpu_custom_call.1} parent=1 // pred_check_branch
      %17 = sbr.rel (0) target = $region9
    $region8: #{tpu_custom_call.1} parent=1 // pred_region
      %19 = vsyncadd [#allocation3], 0
      %s20 = sshll.u32 %s1, 4
      %s21 = int_to_ptr.hbm [resolvable:$true] %s20
      %s22 = sshll.u32 [#allocation2], 4
      %s23 = int_to_ptr.vmem [resolvable:$true] %s22
      %28 = dma.hbm_to_vmem [thread:$0]  %s21, 512, %s23, [#allocation3], 128, 128, 8
    $region9: #{tpu_custom_call.1} parent=1 // pred_fallthru
      _
    // Predicated region
    $region10: #{tpu_custom_call.1} parent=1 // pred_check
      _
    $region11: #{tpu_custom_call.1} parent=1 // pred_check_branch
      %30 = sbr.rel (0) target = $region13
    $region12: #{tpu_custom_call.1} parent=1 // pred_region
      _
    $region13: #{tpu_custom_call.1} parent=1 // pred_fallthru
      _
    // Predicated region
    $region14: #{tpu_custom_call.1} parent=1 // pred_check
      _
    $region15: #{tpu_custom_call.1} parent=1 // pred_check_branch
      %32 = sbr.rel (0) target = $region17
    $region16: #{tpu_custom_call.1} parent=1 // pred_region
      _
    $region17: #{tpu_custom_call.1} parent=1 // pred_fallthru
      _
    // Predicated region
    $region18: #{tpu_custom_call.1} parent=1 // pred_check
      _
    $region19: #{tpu_custom_call.1} parent=1 // pred_check_branch
      %34 = sbr.rel (0) target = $region21
    $region20: #{tpu_custom_call.1} parent=1 // pred_region
      _
    $region21: #{tpu_custom_call.1} parent=1 // pred_fallthru
      _
    // Predicated region
    $region22: #{tpu_custom_call.1} parent=1 // pred_check
      _
    $region23: #{tpu_custom_call.1} parent=1 // pred_check_branch
      %36 = sbr.rel (0) target = $region25
    $region24: #{tpu_custom_call.1} parent=1 // pred_region
      _
    $region25: #{tpu_custom_call.1} parent=1 // pred_fallthru
      _
    // Predicated region
    $region26: #{tpu_custom_call.1} parent=1 // pred_check
      _
    $region27: #{tpu_custom_call.1} parent=1 // pred_check_branch
      %38 = sbr.rel (0) target = $region29
    $region28: #{tpu_custom_call.1} parent=1 // pred_region
      _
    $region29: #{tpu_custom_call.1} parent=1 // pred_fallthru
      _
    // Predicated region
    $region30: #{tpu_custom_call.1} parent=1 // pred_check
      _
    $region31: #{tpu_custom_call.1} parent=1 // pred_check_branch
      %40 = sbr.rel (0) target = $region33
    $region32: #{tpu_custom_call.1} parent=1 // pred_region
      %42 = dma.done [#allocation3], 512
    $region33: #{tpu_custom_call.1} parent=1 // pred_fallthru
      _
    %v43 = vld [vmem:[%s0] sm:$0xff]
    %v44 = vld [vmem:[#allocation2] sm:$0xff]
    %v45 = vld [vmem:[#allocation2 + $0x8] sm:$0xff]
    %v46 = vld [vmem:[#allocation2 + $0x10] sm:$0xff]
    %v47 = vld [vmem:[#allocation2 + $0x18] sm:$0xff]
    %v48 = vld [vmem:[%s2] sm:$0x1]
    %v50 = vperm.slane %v48, 0
    %vm52 = vcmask 261120
    %v54 = vsel %vm52, %v43, 0
    %56 = vmatpush.msra.mxu0 0.0
    %57 = vmatpush.msra.mxu0 0.0
    %58 = vmatpush.msra.mxu0 0.0
    %59 = vmatpush.msra.mxu0 0.0
    %60 = vmatpush.msra.mxu0 0.0
    %61 = vmatpush.msra.mxu0 0.0
    %62 = vmatpush.msra.mxu0 0.0
    %63 = vmatpush.msra.mxu0 0.0
    %64 = vmatpush.msra.mxu0 0.0
    %65 = vmatpush.msra.mxu0 0.0
    %66 = vmatpush.msra.mxu0 0.0
    %67 = vmatpush.msra.mxu0 0.0
    %68 = vmatpush.msra.mxu0 %v47
    %69 = vmatpush.msra.mxu0 %v46
    %70 = vmatpush.msra.mxu0 %v45
    %71 = vmatpush.msra.mxu0 %v44
    %72 = vmatmul.f32.gmra.mxu0 %v54
    %v73 = vpop.f32.mrf.mxu0
    %v74 = vadd.f32 %v50, %v73
    %75 = vdwg.mxu0
    %v76 = vmax.f32 %v74, 0.0
    %v77 = vld [vmem:[%s3] sm:$0xff]
    %v78 = vld [vmem:[%s3 + $0x8] sm:$0xff]
    %v79 = vld [vmem:[%s3 + $0x10] sm:$0xff]
    %v80 = vld [vmem:[%s3 + $0x18] sm:$0xff]
    %v81 = vld [vmem:[%s3 + $0x20] sm:$0xff]
    %v82 = vld [vmem:[%s3 + $0x28] sm:$0xff]
    %v83 = vld [vmem:[%s3 + $0x30] sm:$0xff]
    %v84 = vld [vmem:[%s3 + $0x38] sm:$0xff]
    %v85 = vld [vmem:[%s4] sm:$0x1]
    %v87 = vperm.slane %v85, 0
    %vm89 = vcmask 523264
    %v91 = vsel %vm89, %v76, 0
    %93 = vmatpush.msra.mxu0 0.0
    %94 = vmatpush.msra.mxu0 0.0
    %95 = vmatpush.msra.mxu0 0.0
    %96 = vmatpush.msra.mxu0 0.0
    %97 = vmatpush.msra.mxu0 0.0
    %98 = vmatpush.msra.mxu0 0.0
    %99 = vmatpush.msra.mxu0 0.0
    %100 = vmatpush.msra.mxu0 0.0
    %101 = vmatpush.msra.mxu0 %v84
    %102 = vmatpush.msra.mxu0 %v83
    %103 = vmatpush.msra.mxu0 %v82
    %104 = vmatpush.msra.mxu0 %v81
    %105 = vmatpush.msra.mxu0 %v80
    %106 = vmatpush.msra.mxu0 %v79
    %107 = vmatpush.msra.mxu0 %v78
    %108 = vmatpush.msra.mxu0 %v77
    %109 = vmatmul.f32.gmra.mxu0 %v91
    %v110 = vpop.f32.mrf.mxu0
    %v111 = vadd.f32 %v87, %v110
    %112 = vdwg.mxu0
    %v113 = vmax.f32 %v111, 0.0
    %v114 = vld [vmem:[%s5] sm:$0xff]
    %v115 = vld [vmem:[%s5 + $0x8] sm:$0xff]
    %v116 = vld [vmem:[%s5 + $0x10] sm:$0xff]
    %v117 = vld [vmem:[%s5 + $0x18] sm:$0xff]
    %v118 = vld [vmem:[%s5 + $0x20] sm:$0xff]
    %v119 = vld [vmem:[%s5 + $0x28] sm:$0xff]
    %v120 = vld [vmem:[%s5 + $0x30] sm:$0xff]
    %v121 = vld [vmem:[%s5 + $0x38] sm:$0xff]
    %v122 = vld [vmem:[%s6] sm:$0x1]
    %v124 = vperm.slane %v122, 0
    %v127 = vsel %vm89, %v113, 0
    %129 = vmatpush.msra.mxu0 0.0
    %130 = vmatpush.msra.mxu0 0.0
    %131 = vmatpush.msra.mxu0 0.0
    %132 = vmatpush.msra.mxu0 0.0
    %133 = vmatpush.msra.mxu0 0.0
    %134 = vmatpush.msra.mxu0 0.0
    %135 = vmatpush.msra.mxu0 0.0
    %136 = vmatpush.msra.mxu0 0.0
    %137 = vmatpush.msra.mxu0 %v121
    %138 = vmatpush.msra.mxu0 %v120
    %139 = vmatpush.msra.mxu0 %v119
    %140 = vmatpush.msra.mxu0 %v118
    %141 = vmatpush.msra.mxu0 %v117
    %142 = vmatpush.msra.mxu0 %v116
    %143 = vmatpush.msra.mxu0 %v115
    %144 = vmatpush.msra.mxu0 %v114
    %145 = vmatmul.f32.gmra.mxu0 %v127
    %v146 = vpop.f32.mrf.mxu0
    %v147 = vadd.f32 %v124, %v146
    %148 = vdwg.mxu0
    %v149 = vxor.u32 %v147, 2147483648
    %v150 = vmul.f32 %v149, 1.442695
    %v151 = vpow.pop %v150
    %v152 = vadd.f32 %v151, 1.0
    %v153 = vrcp.pop %v152
    %v154 = vmul.f32 %v152, %v153
    %v155 = vsub.f32 1.0, %v154
    %v156 = vmul.f32 %v153, %v155
    %v157 = vadd.f32 %v153, %v156
    %vm158 = vweird.f32 %v152
    %vm159 = vweird.f32 %v153
    %vm160 = vmor %vm158, %vm159
    %v161 = vsel %vm160, %v153, %v157
    %v162 = vand.u32 2147483647, %v152
    %vm163 = vcmp.eq.f32.partialorder %v162, 8.507059e+37
    %v164 = vand.u32 %v152, 2147483648
    %v165 = vor.u32 1.1754944e-38, %v164
    %v166 = vsel %vm163, %v165, %v161
    %v167 = vmul.f32 1.0, %v166
    %vm168 = vcmask 64512
    %169 = vst.msk [vmem:[#allocation5] sm:$0xff] %vm168, %v167
    // Predicated region
    $region34: #{tpu_custom_call.1} parent=1 // pred_check
      _
    $region35: #{tpu_custom_call.1} parent=1 // pred_check_branch
      %171 = sbr.rel (0) target = $region37
    $region36: #{tpu_custom_call.1} parent=1 // pred_region
      %173 = vsyncadd [#allocation4], 0
      %s175 = sshll.u32 [#allocation5], 4
      %s176 = int_to_ptr.vmem [resolvable:$true] %s175
      %s177 = sshll.u32 %s7, 4
      %s178 = int_to_ptr.hbm [resolvable:$true] %s177
      %180 = dma.vmem_to_hbm [thread:$0]  %s176, 128, %s178, [#allocation4]
    $region37: #{tpu_custom_call.1} parent=1 // pred_fallthru
      _
    // Predicated region
    $region38: #{tpu_custom_call.1} parent=1 // pred_check
      _
    $region39: #{tpu_custom_call.1} parent=1 // pred_check_branch
      %182 = sbr.rel (0) target = $region41
    $region40: #{tpu_custom_call.1} parent=1 // pred_region
      %184 = dma.done [#allocation4], 128
    $region41: #{tpu_custom_call.1} parent=1 // pred_fallthru
      _
    %185 = vsyncpa [#allocation3], 1
    %186 = vsyncpa [#allocation4], 1

</llo_original>
